<compile_context>
chip_gen: v5e
topology: v5e:2x2
jax: 0.10.0
libtpu: 0.0.40
codegen_flags: <defaults>
</compile_context>

<pallas_src>
import functools

import jax
import jax.numpy as jnp
from jax.experimental import pallas as pl
from jax.experimental.pallas import tpu as pltpu

PORT_DIM = 32
PROTOCOL_DIM = 8
HIDDEN = 256


def _round_up(x, m):
    return (x + m - 1) // m * m


def _mlp_kernel(x_ref, w1_ref, b1_ref, w2_ref, b2_ref, w3_ref, b3_ref, o_ref):
    # fc1 + relu: single lane-dense dot over the merged/padded input,
    # f32 accumulation on the MXU, bias+relu on the VPU in f32.
    h = jnp.dot(x_ref[...], w1_ref[...], preferred_element_type=jnp.float32)
    h = jnp.maximum(h + b1_ref[...], 0.0)
    # fc2 + relu (bf16 operands into the MXU, f32 accumulate).
    h = jnp.dot(h.astype(jnp.bfloat16), w2_ref[...],
                preferred_element_type=jnp.float32)
    h = jnp.maximum(h + b2_ref[...], 0.0)
    # fc3 (no activation); lane-dense 128-col padded output, bf16 store.
    out = jnp.dot(h.astype(jnp.bfloat16), w3_ref[...],
                  preferred_element_type=jnp.float32) + b3_ref[...]
    o_ref[...] = out.astype(o_ref.dtype)


def deep_flow_mlp(x_in, params, block_m=2048):
    """fc1->relu->fc2->relu->fc3 on the merged (B, d_in_pad) bf16 input."""
    B, d_in_pad = x_in.shape
    n_out_pad = params["w3"].shape[1]

    # Large batch tile (amortize per-grid-step pipeline overhead), rounded to
    # a multiple of 256, but keep >=2 grid steps when B is large so both v7x
    # TensorCores are used.
    b_round = _round_up(B, 256)
    tm = max(256, min(block_m, _round_up(pl.cdiv(b_round, 2), 256)))
    Bp = _round_up(B, tm)
    if Bp != B:
        x_in = jnp.pad(x_in, ((0, Bp - B), (0, 0)))
    grid = (Bp // tm,)

    def w_spec(a):
        # Weights/biases stay VMEM-resident across the whole grid.
        return pl.BlockSpec(a.shape, lambda i, _nd=a.ndim: (0,) * _nd)

    flops = 2 * Bp * (d_in_pad * HIDDEN + HIDDEN * HIDDEN + HIDDEN * n_out_pad)
    w_bytes = sum(int(params[k].size) * params[k].dtype.itemsize
                  for k in ("w1", "b1", "w2", "b2", "w3", "b3"))
    bytes_accessed = Bp * d_in_pad * 2 + w_bytes + Bp * n_out_pad * 2

    out = pl.pallas_call(
        _mlp_kernel,
        out_shape=jax.ShapeDtypeStruct((Bp, n_out_pad), jnp.bfloat16),
        grid=grid,
        in_specs=[pl.BlockSpec((tm, d_in_pad), lambda i: (i, 0)),
                  w_spec(params["w1"]), w_spec(params["b1"]),
                  w_spec(params["w2"]), w_spec(params["b2"]),
                  w_spec(params["w3"]), w_spec(params["b3"])],
        out_specs=pl.BlockSpec((tm, n_out_pad), lambda i: (i, 0)),
        compiler_params=pltpu.CompilerParams(
            dimension_semantics=("parallel",)),
        cost_estimate=pl.CostEstimate(flops=flops, transcendentals=0,
                                      bytes_accessed=bytes_accessed),
    )(x_in,
      params["w1"], params["b1"], params["w2"], params["b2"],
      params["w3"], params["b3"])
    return out


def init_params(key, n_inputs, n_outputs):
    """Parameter init mirroring the module's shapes.

    Weights stored (in_dim, out_dim) so the kernel computes x @ W + b
    (== PyTorch's x @ W.T + b). fc1's rows follow the concat order
    [port_emb | protocol_emb | x_feat] and are zero-padded to the merged
    lane-friendly input width; fc3's columns are zero-padded to a lane-dense
    128-wide output. MXU-facing weights are bf16; biases stay f32.
    """
    n_feat = n_inputs - 2
    d_in = n_feat + PORT_DIM + PROTOCOL_DIM
    d_in_pad = _round_up(d_in, 16)          # 50 -> 64 (bf16 sublane friendly)
    n_out_pad = _round_up(n_outputs, 128)   # lane-dense output
    ks = jax.random.split(key, 8)

    def lin(kw, kb, din, dout):
        bound = 1.0 / (din ** 0.5)
        w = jax.random.uniform(kw, (din, dout), jnp.float32, -bound, bound)
        b = jax.random.uniform(kb, (1, dout), jnp.float32, -bound, bound)
        return w, b

    port_tbl = jax.random.normal(ks[0], (65536, PORT_DIM), jnp.float32)
    proto_tbl = jax.random.normal(ks[1], (256, PROTOCOL_DIM), jnp.float32)
    w1, b1 = lin(ks[2], ks[3], d_in, HIDDEN)
    w2, b2 = lin(ks[4], ks[5], HIDDEN, HIDDEN)
    w3, b3 = lin(ks[6], ks[7], HIDDEN, n_outputs)

    w1p = jnp.zeros((d_in_pad, HIDDEN), jnp.float32).at[:d_in].set(w1)
    w3p = jnp.zeros((HIDDEN, n_out_pad), jnp.float32).at[:, :n_outputs].set(w3)
    b3p = jnp.zeros((1, n_out_pad), jnp.float32).at[:, :n_outputs].set(b3)

    # TODO(synk): on v7x, w2/w3 could be fp8 (bf16 activations, f32 acc) if the
    # large-batch regime becomes MXU-bound; kept bf16 here for accuracy parity.
    params = {
        "w1": w1p.astype(jnp.bfloat16), "b1": b1,
        "w2": w2.astype(jnp.bfloat16), "b2": b2,
        "w3": w3p.astype(jnp.bfloat16), "b3": b3p,
    }
    return port_tbl, proto_tbl, params


@functools.partial(jax.jit, static_argnames=("n_outputs", "block_m"))
def deep_flow_forward(x_port, x_protocol, x_feat, port_tbl, proto_tbl, params,
                      n_outputs, block_m=2048):
    B = x_port.shape[0]
    n_feat = x_feat.shape[1]
    d_in = PORT_DIM + PROTOCOL_DIM + n_feat
    d_in_pad = params["w1"].shape[0]
    # TODO(synk): the 65536/256-row embedding gathers stay as XLA ops; fully
    # fusing them into the kernel would need per-row scalar-prefetch DMA.
    port_emb = jnp.take(port_tbl, x_port.astype(jnp.int32), axis=0)      # (B, 32)
    proto_emb = jnp.take(proto_tbl, x_protocol.astype(jnp.int32), axis=0)  # (B, 8)
    pieces = [port_emb, proto_emb, x_feat]
    if d_in_pad > d_in:
        pieces.append(jnp.zeros((B, d_in_pad - d_in), x_feat.dtype))
    x_in = jnp.concatenate(pieces, axis=1).astype(jnp.bfloat16)          # (B, 64)
    out = deep_flow_mlp(x_in, params, block_m=block_m)
    return out[:B, :n_outputs].astype(jnp.float32)


if __name__ == "__main__":
    key = jax.random.PRNGKey(0)
    k_param, k_port, k_proto, k_feat = jax.random.split(key, 4)

    # Small, module-consistent shapes: batch=8, n_inputs=12 (2 categorical +
    # 10 continuous features), n_outputs=4.
    B = 8
    n_inputs = 12
    n_outputs = 4
    n_feat = n_inputs - 2

    port_tbl, proto_tbl, params = init_params(k_param, n_inputs, n_outputs)

    x_port = jax.random.randint(k_port, (B,), 0, 65536, dtype=jnp.int32)
    x_protocol = jax.random.randint(k_proto, (B,), 0, 256, dtype=jnp.int32)
    x_feat = jax.random.normal(k_feat, (B, n_feat), jnp.float32)

    out = deep_flow_forward(x_port, x_protocol, x_feat, port_tbl, proto_tbl,
                            params, n_outputs=n_outputs)
    out = jax.block_until_ready(out)

    # Pure-JAX reference matching the kernel's bf16 cast points.
    d_in = PORT_DIM + PROTOCOL_DIM + n_feat
    d_in_pad = params["w1"].shape[0]
    pe = jnp.take(port_tbl, x_port, axis=0)
    re = jnp.take(proto_tbl, x_protocol, axis=0)
    x_cat = jnp.concatenate(
        [pe, re, x_feat, jnp.zeros((B, d_in_pad - d_in), jnp.float32)],
        axis=1).astype(jnp.bfloat16)
    h = jnp.dot(x_cat, params["w1"], preferred_element_type=jnp.float32)
    h = jnp.maximum(h + params["b1"], 0.0)
    h = jnp.dot(h.astype(jnp.bfloat16), params["w2"],
                preferred_element_type=jnp.float32)
    h = jnp.maximum(h + params["b2"], 0.0)
    ref = (jnp.dot(h.astype(jnp.bfloat16), params["w3"],
                   preferred_element_type=jnp.float32) + params["b3"])
    ref = ref.astype(jnp.bfloat16)[:, :n_outputs].astype(jnp.float32)

    assert out.shape == (B, n_outputs)
    assert jnp.allclose(out, ref, atol=2e-2, rtol=2e-2), \
        float(jnp.max(jnp.abs(out - ref)))

    print("KERNEL_OK")
</pallas_src>

<mosaic_0001>
module attributes {stable_mosaic.version = 11 : i64} {
  func.func @_mlp_kernel(%arg0: i32, %arg1: memref<256x64xbf16, #tpu.memory_space<vmem>>, %arg2: memref<64x256xbf16, #tpu.memory_space<vmem>>, %arg3: memref<1x256xf32, #tpu.memory_space<vmem>>, %arg4: memref<256x256xbf16, #tpu.memory_space<vmem>>, %arg5: memref<1x256xf32, #tpu.memory_space<vmem>>, %arg6: memref<256x128xbf16, #tpu.memory_space<vmem>>, %arg7: memref<1x128xf32, #tpu.memory_space<vmem>>, %arg8: memref<256x128xbf16, #tpu.memory_space<vmem>>) attributes {dimension_semantics = [#tpu.dimension_semantics<parallel>], iteration_bounds = array<i64: 1>, scalar_prefetch = 0 : i64, scratch_operands = 0 : i64, tpu.core_type = #tpu.core_type<tc>, window_params = [{transform_indices = @transform_0, window_bounds = array<i64: 256, 64>}, {pipeline_mode = #tpu.pipeline_mode<synchronous>, transform_indices = @transform_1, window_bounds = array<i64: 64, 256>}, {pipeline_mode = #tpu.pipeline_mode<synchronous>, transform_indices = @transform_2, window_bounds = array<i64: 1, 256>}, {pipeline_mode = #tpu.pipeline_mode<synchronous>, transform_indices = @transform_3, window_bounds = array<i64: 256, 256>}, {pipeline_mode = #tpu.pipeline_mode<synchronous>, transform_indices = @transform_4, window_bounds = array<i64: 1, 256>}, {pipeline_mode = #tpu.pipeline_mode<synchronous>, transform_indices = @transform_5, window_bounds = array<i64: 256, 128>}, {pipeline_mode = #tpu.pipeline_mode<synchronous>, transform_indices = @transform_6, window_bounds = array<i64: 1, 128>}, {transform_indices = @transform_7, window_bounds = array<i64: 256, 128>}]} {
    %c0 = arith.constant 0 : index
    %c0_0 = arith.constant 0 : index
    %0 = vector.load %arg1[%c0, %c0_0] : memref<256x64xbf16, #tpu.memory_space<vmem>>, vector<256x64xbf16>
    %c0_1 = arith.constant 0 : index
    %c0_2 = arith.constant 0 : index
    %1 = vector.load %arg2[%c0_1, %c0_2] : memref<64x256xbf16, #tpu.memory_space<vmem>>, vector<64x256xbf16>
    %cst = arith.constant dense<0.000000e+00> : vector<256x256xf32>
    %2 = tpu.matmul %0, %1, %cst {dimension_numbers = #tpu.dot_dimension_numbers<[1], [0], [0], [1], [0, 0, 1, 1], [], []>} : vector<256x64xbf16>, vector<64x256xbf16>, vector<256x256xf32> -> vector<256x256xf32>
    %c0_3 = arith.constant 0 : index
    %c0_4 = arith.constant 0 : index
    %3 = vector.load %arg3[%c0_3, %c0_4] : memref<1x256xf32, #tpu.memory_space<vmem>>, vector<1x256xf32>
    %4 = vector.broadcast %3 : vector<1x256xf32> to vector<256x256xf32>
    %5 = arith.addf %2, %4 : vector<256x256xf32>
    %cst_5 = arith.constant 0.000000e+00 : f32
    %6 = vector.broadcast %cst_5 : f32 to vector<256x256xf32>
    %7 = arith.maximumf %5, %6 : vector<256x256xf32>
    %8 = arith.truncf %7 : vector<256x256xf32> to vector<256x256xbf16>
    %c0_6 = arith.constant 0 : index
    %c0_7 = arith.constant 0 : index
    %9 = vector.load %arg4[%c0_6, %c0_7] : memref<256x256xbf16, #tpu.memory_space<vmem>>, vector<256x256xbf16>
    %cst_8 = arith.constant dense<0.000000e+00> : vector<256x256xf32>
    %10 = tpu.matmul %8, %9, %cst_8 {dimension_numbers = #tpu.dot_dimension_numbers<[1], [0], [0], [1], [0, 0, 1, 1], [], []>} : vector<256x256xbf16>, vector<256x256xbf16>, vector<256x256xf32> -> vector<256x256xf32>
    %c0_9 = arith.constant 0 : index
    %c0_10 = arith.constant 0 : index
    %11 = vector.load %arg5[%c0_9, %c0_10] : memref<1x256xf32, #tpu.memory_space<vmem>>, vector<1x256xf32>
    %12 = vector.broadcast %11 : vector<1x256xf32> to vector<256x256xf32>
    %13 = arith.addf %10, %12 : vector<256x256xf32>
    %cst_11 = arith.constant 0.000000e+00 : f32
    %14 = vector.broadcast %cst_11 : f32 to vector<256x256xf32>
    %15 = arith.maximumf %13, %14 : vector<256x256xf32>
    %16 = arith.truncf %15 : vector<256x256xf32> to vector<256x256xbf16>
    %c0_12 = arith.constant 0 : index
    %c0_13 = arith.constant 0 : index
    %17 = vector.load %arg6[%c0_12, %c0_13] : memref<256x128xbf16, #tpu.memory_space<vmem>>, vector<256x128xbf16>
    %cst_14 = arith.constant dense<0.000000e+00> : vector<256x128xf32>
    %18 = tpu.matmul %16, %17, %cst_14 {dimension_numbers = #tpu.dot_dimension_numbers<[1], [0], [0], [1], [0, 0, 1, 1], [], []>} : vector<256x256xbf16>, vector<256x128xbf16>, vector<256x128xf32> -> vector<256x128xf32>
    %c0_15 = arith.constant 0 : index
    %c0_16 = arith.constant 0 : index
    %19 = vector.load %arg7[%c0_15, %c0_16] : memref<1x128xf32, #tpu.memory_space<vmem>>, vector<1x128xf32>
    %20 = vector.broadcast %19 : vector<1x128xf32> to vector<256x128xf32>
    %21 = arith.addf %18, %20 : vector<256x128xf32>
    %22 = arith.truncf %21 : vector<256x128xf32> to vector<256x128xbf16>
    %c0_17 = arith.constant 0 : index
    %c0_18 = arith.constant 0 : index
    %23 = vector.load %arg8[%c0_17, %c0_18] : memref<256x128xbf16, #tpu.memory_space<vmem>>, vector<256x128xbf16>
    tpu.vector_store %arg8[%c0_17, %c0_18], %22 {strides = array<i32>} : memref<256x128xbf16, #tpu.memory_space<vmem>>, vector<256x128xbf16>,
    return
  }
  func.func @transform_0(%arg0: i32) -> (i32, i32) {
    %c0_i32 = arith.constant 0 : i32
    %c0_i32_0 = arith.constant 0 : i32
    return %arg0, %c0_i32 : i32, i32
  }
  func.func @transform_1(%arg0: i32) -> (i32, i32) {
    %c0_i32 = arith.constant 0 : i32
    %c0_i32_0 = arith.constant 0 : i32
    %c0_i32_1 = arith.constant 0 : i32
    return %c0_i32, %c0_i32_0 : i32, i32
  }
  func.func @transform_2(%arg0: i32) -> (i32, i32) {
    %c0_i32 = arith.constant 0 : i32
    %c0_i32_0 = arith.constant 0 : i32
    %c0_i32_1 = arith.constant 0 : i32
    return %c0_i32, %c0_i32_0 : i32, i32
  }
  func.func @transform_3(%arg0: i32) -> (i32, i32) {
    %c0_i32 = arith.constant 0 : i32
    %c0_i32_0 = arith.constant 0 : i32
    %c0_i32_1 = arith.constant 0 : i32
    return %c0_i32, %c0_i32_0 : i32, i32
  }
  func.func @transform_4(%arg0: i32) -> (i32, i32) {
    %c0_i32 = arith.constant 0 : i32
    %c0_i32_0 = arith.constant 0 : i32
    %c0_i32_1 = arith.constant 0 : i32
    return %c0_i32, %c0_i32_0 : i32, i32
  }
  func.func @transform_5(%arg0: i32) -> (i32, i32) {
    %c0_i32 = arith.constant 0 : i32
    %c0_i32_0 = arith.constant 0 : i32
    %c0_i32_1 = arith.constant 0 : i32
    return %c0_i32, %c0_i32_0 : i32, i32
  }
  func.func @transform_6(%arg0: i32) -> (i32, i32) {
    %c0_i32 = arith.constant 0 : i32
    %c0_i32_0 = arith.constant 0 : i32
    %c0_i32_1 = arith.constant 0 : i32
    return %c0_i32, %c0_i32_0 : i32, i32
  }
  func.func @transform_7(%arg0: i32) -> (i32, i32) {
    %c0_i32 = arith.constant 0 : i32
    %c0_i32_0 = arith.constant 0 : i32
    return %arg0, %c0_i32 : i32, i32
  }
}

</mosaic_0001>

<llo_original>
// kernel: deep_flow_forward.1
$region0: #{deep_flow_forward.1}
  #allocation0 [shape = 'u32[]', space=smem, size = 0x4, offset = 0x4, fixed_abs, tag = 'smem constant byte address 0x4 - core index']
  #allocation1 [shape = 'u32[72,128]{1,0:T(1,128)}', space=vmem, size = 0x9000, scoped, tag = 'internal scratch']
  %s0 = inlined_call_operand.vmem [shape: bf16[256,64], index: 0, kind: input, shape index: {}]
  %s1 = inlined_call_operand.vmem [shape: bf16[64,256], index: 1, kind: input, shape index: {}]
  %s2 = inlined_call_operand.vmem [shape: f32[1,256], index: 2, kind: input, shape index: {}]
  %s3 = inlined_call_operand.vmem [shape: bf16[256,256], index: 3, kind: input, shape index: {}]
  %s4 = inlined_call_operand.vmem [shape: f32[1,256], index: 4, kind: input, shape index: {}]
  %s5 = inlined_call_operand.vmem [shape: bf16[256,128], index: 5, kind: input, shape index: {}]
  %s6 = inlined_call_operand.vmem [shape: f32[1,128], index: 6, kind: input, shape index: {}]
  %s7 = inlined_call_operand.vmem [shape: bf16[256,128], index: 7, kind: output, shape index: {}]
  %s8 = sld [smem:[#allocation0]]
  $region38: #{deep_flow_forward.1} parent=0
    _
  %s10 = ssub.s32 1, %s8
  %s11 = scalar_select 0, %s10, %s8
  // Predicated region
  $region2: #{deep_flow_forward.1} parent=0 // pred_check
    _
  $region3: #{deep_flow_forward.1} parent=0 // pred_check_branch
    %13 = sbr.rel (0) target = $region5
  $region4: #{deep_flow_forward.1} parent=0 // pred_region
    _
  $region5: #{deep_flow_forward.1} parent=0 // pred_fallthru
    _
  // Predicated region
  $region6: #{deep_flow_forward.1} parent=0 // pred_check
    _
  $region7: #{deep_flow_forward.1} parent=0 // pred_check_branch
    %15 = sbr.rel (0) target = $region9
  $region8: #{deep_flow_forward.1} parent=0 // pred_region
    _
  $region9: #{deep_flow_forward.1} parent=0 // pred_fallthru
    _
  // Predicated region
  $region10: #{deep_flow_forward.1} parent=0 // pred_check
    _
  $region11: #{deep_flow_forward.1} parent=0 // pred_check_branch
    %17 = sbr.rel (0) target = $region13
  $region12: #{deep_flow_forward.1} parent=0 // pred_region
    _
  $region13: #{deep_flow_forward.1} parent=0 // pred_fallthru
    _
  // Predicated region
  $region14: #{deep_flow_forward.1} parent=0 // pred_check
    _
  $region15: #{deep_flow_forward.1} parent=0 // pred_check_branch
    %19 = sbr.rel (0) target = $region17
  $region16: #{deep_flow_forward.1} parent=0 // pred_region
    _
  $region17: #{deep_flow_forward.1} parent=0 // pred_fallthru
    _
  // Predicated region
  $region18: #{deep_flow_forward.1} parent=0 // pred_check
    _
  $region19: #{deep_flow_forward.1} parent=0 // pred_check_branch
    %21 = sbr.rel (0) target = $region21
  $region20: #{deep_flow_forward.1} parent=0 // pred_region
    _
  $region21: #{deep_flow_forward.1} parent=0 // pred_fallthru
    _
  // Predicated region
  $region22: #{deep_flow_forward.1} parent=0 // pred_check
    _
  $region23: #{deep_flow_forward.1} parent=0 // pred_check_branch
    %23 = sbr.rel (0) target = $region25
  $region24: #{deep_flow_forward.1} parent=0 // pred_region
    _
  $region25: #{deep_flow_forward.1} parent=0 // pred_fallthru
    _
  // Predicated region
  $region26: #{deep_flow_forward.1} parent=0 // pred_check
    _
  $region27: #{deep_flow_forward.1} parent=0 // pred_check_branch
    %25 = sbr.rel (0) target = $region29
  $region28: #{deep_flow_forward.1} parent=0 // pred_region
    _
  $region29: #{deep_flow_forward.1} parent=0 // pred_fallthru
    _
  %v27 = vld [vmem:[%s0] sm:$0xf]
  %v28 = vld [vmem:[%s0 + $0x4] sm:$0xf]
  %v29 = vld [vmem:[%s0 + $0x8] sm:$0xf]
  %v30 = vld [vmem:[%s0 + $0xc] sm:$0xf]
  %v31 = vld [vmem:[%s0 + $0x10] sm:$0xf]
  %v32 = vld [vmem:[%s0 + $0x14] sm:$0xf]
  %v33 = vld [vmem:[%s0 + $0x18] sm:$0xf]
  %v34 = vld [vmem:[%s0 + $0x1c] sm:$0xf]
  %v35 = vld [vmem:[%s0 + $0x20] sm:$0xf]
  %v36 = vld [vmem:[%s0 + $0x24] sm:$0xf]
  %v37 = vld [vmem:[%s0 + $0x28] sm:$0xf]
  %v38 = vld [vmem:[%s0 + $0x2c] sm:$0xf]
  %v39 = vld [vmem:[%s0 + $0x30] sm:$0xf]
  %v40 = vld [vmem:[%s0 + $0x34] sm:$0xf]
  %v41 = vld [vmem:[%s0 + $0x38] sm:$0xf]
  %v42 = vld [vmem:[%s0 + $0x3c] sm:$0xf]
  %v43 = vld [vmem:[%s0 + $0x40] sm:$0xf]
  %v44 = vld [vmem:[%s0 + $0x44] sm:$0xf]
  %v45 = vld [vmem:[%s0 + $0x48] sm:$0xf]
  %v46 = vld [vmem:[%s0 + $0x4c] sm:$0xf]
  %v47 = vld [vmem:[%s0 + $0x50] sm:$0xf]
  %v48 = vld [vmem:[%s0 + $0x54] sm:$0xf]
  %v49 = vld [vmem:[%s0 + $0x58] sm:$0xf]
  %v50 = vld [vmem:[%s0 + $0x5c] sm:$0xf]
  %v51 = vld [vmem:[%s0 + $0x60] sm:$0xf]
  %v52 = vld [vmem:[%s0 + $0x64] sm:$0xf]
  %v53 = vld [vmem:[%s0 + $0x68] sm:$0xf]
  %v54 = vld [vmem:[%s0 + $0x6c] sm:$0xf]
  %v55 = vld [vmem:[%s0 + $0x70] sm:$0xf]
  %v56 = vld [vmem:[%s0 + $0x74] sm:$0xf]
  %v57 = vld [vmem:[%s0 + $0x78] sm:$0xf]
  %v58 = vld [vmem:[%s0 + $0x7c] sm:$0xf]
  %v59 = vld [vmem:[%s1] sm:$0xff]
  %v60 = vld [vmem:[%s1 + $0x8] sm:$0xff]
  %v61 = vld [vmem:[%s1 + $0x10] sm:$0xff]
  %v62 = vld [vmem:[%s1 + $0x18] sm:$0xff]
  %v63 = vld [vmem:[%s1 + $0x20] sm:$0xff]
  %v64 = vld [vmem:[%s1 + $0x28] sm:$0xff]
  %v65 = vld [vmem:[%s1 + $0x30] sm:$0xff]
  %v66 = vld [vmem:[%s1 + $0x38] sm:$0xff]
  %v67 = vld [vmem:[%s2] sm:$0x3]
  %v69 = vperm.slane %v67, 0
  %v70 = vperm.slane %v67, 1
  %v105 = vunpack.c.l.b16 %v27
  %v106 = vunpack.c.l.b16 %v28
  %v107 = vunpack.c.l.b16 %v29
  %v108 = vunpack.c.l.b16 %v30
  %v109 = vunpack.c.l.b16 %v31
  %v110 = vunpack.c.l.b16 %v32
  %v111 = vunpack.c.l.b16 %v33
  %v112 = vunpack.c.l.b16 %v34
  %v113 = vunpack.c.l.b16 %v35
  %v114 = vunpack.c.l.b16 %v36
  %v115 = vunpack.c.l.b16 %v37
  %v116 = vunpack.c.l.b16 %v38
  %v117 = vunpack.c.l.b16 %v39
  %v118 = vunpack.c.l.b16 %v40
  %v119 = vunpack.c.l.b16 %v41
  %v120 = vunpack.c.l.b16 %v42
  %v121 = vunpack.c.l.b16 %v43
  %v122 = vunpack.c.l.b16 %v44
  %v123 = vunpack.c.l.b16 %v45
  %v124 = vunpack.c.l.b16 %v46
  %v125 = vunpack.c.l.b16 %v47
  %v126 = vunpack.c.l.b16 %v48
  %v127 = vunpack.c.l.b16 %v49
  %v128 = vunpack.c.l.b16 %v50
  %v129 = vunpack.c.l.b16 %v51
  %v130 = vunpack.c.l.b16 %v52
  %v131 = vunpack.c.l.b16 %v53
  %v132 = vunpack.c.l.b16 %v54
  %v133 = vunpack.c.l.b16 %v55
  %v134 = vunpack.c.l.b16 %v56
  %v135 = vunpack.c.l.b16 %v57
  %v136 = vunpack.c.l.b16 %v58
  %v137 = vpack.c.b16 %v106, %v105
  %v138 = vpack.c.b16 %v108, %v107
  %v139 = vpack.c.b16 %v110, %v109
  %v140 = vpack.c.b16 %v112, %v111
  %v141 = vpack.c.b16 %v114, %v113
  %v142 = vpack.c.b16 %v116, %v115
  %v143 = vpack.c.b16 %v118, %v117
  %v144 = vpack.c.b16 %v120, %v119
  %v145 = vpack.c.b16 %v122, %v121
  %v146 = vpack.c.b16 %v124, %v123
  %v147 = vpack.c.b16 %v126, %v125
  %v148 = vpack.c.b16 %v128, %v127
  %v149 = vpack.c.b16 %v130, %v129
  %v150 = vpack.c.b16 %v132, %v131
  %v151 = vpack.c.b16 %v134, %v133
  %v152 = vpack.c.b16 %v136, %v135
  %v161 = vunpack.c.l.b16 %v59
  %v162 = vunpack.c.h.b16 %v59
  %v163 = vunpack.c.l.b16 %v60
  %v164 = vunpack.c.h.b16 %v60
  %v165 = vunpack.c.l.b16 %v61
  %v166 = vunpack.c.h.b16 %v61
  %v167 = vunpack.c.l.b16 %v62
  %v168 = vunpack.c.h.b16 %v62
  %v169 = vunpack.c.l.b16 %v63
  %v170 = vunpack.c.h.b16 %v63
  %v171 = vunpack.c.l.b16 %v64
  %v172 = vunpack.c.h.b16 %v64
  %v173 = vunpack.c.l.b16 %v65
  %v174 = vunpack.c.h.b16 %v65
  %v175 = vunpack.c.l.b16 %v66
  %v176 = vunpack.c.h.b16 %v66
  %v177 = vpack.c.b16 %v163, %v161
  %v178 = vpack.c.b16 %v164, %v162
  %v179 = vpack.c.b16 %v167, %v165
  %v180 = vpack.c.b16 %v168, %v166
  %v181 = vpack.c.b16 %v171, %v169
  %v182 = vpack.c.b16 %v172, %v170
  %v183 = vpack.c.b16 %v175, %v173
  %v184 = vpack.c.b16 %v176, %v174
  %vm193 = vcmask 523264
  %v195 = vsel %vm193, %v137, 0
  %v198 = vsel %vm193, %v138, 0
  %v201 = vsel %vm193, %v139, 0
  %v204 = vsel %vm193, %v140, 0
  %v207 = vsel %vm193, %v141, 0
  %v210 = vsel %vm193, %v142, 0
  %v213 = vsel %vm193, %v143, 0
  %v216 = vsel %vm193, %v144, 0
  %v219 = vsel %vm193, %v145, 0
  %v222 = vsel %vm193, %v146, 0
  %v225 = vsel %vm193, %v147, 0
  %v228 = vsel %vm193, %v148, 0
  %v231 = vsel %vm193, %v149, 0
  %v234 = vsel %vm193, %v150, 0
  %v237 = vsel %vm193, %v151, 0
  %v240 = vsel %vm193, %v152, 0
  %242 = vmatpush.bf16.msra.mxu0 0
  %243 = vmatpush.bf16.msra.mxu0 0
  %244 = vmatpush.bf16.msra.mxu0 0
  %245 = vmatpush.bf16.msra.mxu0 0
  %246 = vmatpush.bf16.msra.mxu0 %v183
  %247 = vmatpush.bf16.msra.mxu0 %v181
  %248 = vmatpush.bf16.msra.mxu0 %v179
  %249 = vmatpush.bf16.msra.mxu0 %v177
  %250 = vmatmul.bf16.gmra.mxu0 %v195
  %v251 = vpop.f32.mrf.mxu0
  %v252 = vadd.f32 %v69, %v251
  %v253 = vpop.f32.mrf.mxu0
  %v254 = vadd.f32 %v69, %v253
  %255 = vmatmul.bf16.gmra.mxu0 %v198
  %v256 = vpop.f32.mrf.mxu0
  %v257 = vadd.f32 %v69, %v256
  %v258 = vpop.f32.mrf.mxu0
  %v259 = vadd.f32 %v69, %v258
  %260 = vmatmul.bf16.gmra.mxu0 %v201
  %v261 = vpop.f32.mrf.mxu0
  %v262 = vadd.f32 %v69, %v261
  %v263 = vpop.f32.mrf.mxu0
  %v264 = vadd.f32 %v69, %v263
  %265 = vmatmul.bf16.gmra.mxu0 %v204
  %v266 = vpop.f32.mrf.mxu0
  %v267 = vadd.f32 %v69, %v266
  %v268 = vpop.f32.mrf.mxu0
  %v269 = vadd.f32 %v69, %v268
  %270 = vmatmul.bf16.gmra.mxu0 %v207
  %v271 = vpop.f32.mrf.mxu0
  %v272 = vadd.f32 %v69, %v271
  %v273 = vpop.f32.mrf.mxu0
  %v274 = vadd.f32 %v69, %v273
  %275 = vmatmul.bf16.gmra.mxu0 %v210
  %v276 = vpop.f32.mrf.mxu0
  %v277 = vadd.f32 %v69, %v276
  %v278 = vpop.f32.mrf.mxu0
  %v279 = vadd.f32 %v69, %v278
  %280 = vmatmul.bf16.gmra.mxu0 %v213
  %v281 = vpop.f32.mrf.mxu0
  %v282 = vadd.f32 %v69, %v281
  %v283 = vpop.f32.mrf.mxu0
  %v284 = vadd.f32 %v69, %v283
  %285 = vmatmul.bf16.gmra.mxu0 %v216
  %v286 = vpop.f32.mrf.mxu0
  %v287 = vadd.f32 %v69, %v286
  %v288 = vpop.f32.mrf.mxu0
  %v289 = vadd.f32 %v69, %v288
  %290 = vmatmul.bf16.gmra.mxu0 %v219
  %v291 = vpop.f32.mrf.mxu0
  %v292 = vadd.f32 %v69, %v291
  %v293 = vpop.f32.mrf.mxu0
  %v294 = vadd.f32 %v69, %v293
  %295 = vmatmul.bf16.gmra.mxu0 %v222
  %v296 = vpop.f32.mrf.mxu0
  %v297 = vadd.f32 %v69, %v296
  %v298 = vpop.f32.mrf.mxu0
  %v299 = vadd.f32 %v69, %v298
  %300 = vmatmul.bf16.gmra.mxu0 %v225
  %v301 = vpop.f32.mrf.mxu0
  %v302 = vadd.f32 %v69, %v301
  %v303 = vpop.f32.mrf.mxu0
  %v304 = vadd.f32 %v69, %v303
  %305 = vmatmul.bf16.gmra.mxu0 %v228
  %v306 = vpop.f32.mrf.mxu0
  %v307 = vadd.f32 %v69, %v306
  %v308 = vpop.f32.mrf.mxu0
  %v309 = vadd.f32 %v69, %v308
  %310 = vmatmul.bf16.gmra.mxu0 %v231
  %v311 = vpop.f32.mrf.mxu0
  %v312 = vadd.f32 %v69, %v311
  %v313 = vpop.f32.mrf.mxu0
  %v314 = vadd.f32 %v69, %v313
  %315 = vmatmul.bf16.gmra.mxu0 %v234
  %v316 = vpop.f32.mrf.mxu0
  %v317 = vadd.f32 %v69, %v316
  %v318 = vpop.f32.mrf.mxu0
  %v319 = vadd.f32 %v69, %v318
  %320 = vmatmul.bf16.gmra.mxu0 %v237
  %v321 = vpop.f32.mrf.mxu0
  %v322 = vadd.f32 %v69, %v321
  %v323 = vpop.f32.mrf.mxu0
  %v324 = vadd.f32 %v69, %v323
  %325 = vmatmul.bf16.gmra.mxu0 %v240
  %v326 = vpop.f32.mrf.mxu0
  %v327 = vadd.f32 %v69, %v326
  %v328 = vpop.f32.mrf.mxu0
  %v329 = vadd.f32 %v69, %v328
  %330 = vdwg.mxu0
  %331 = vmatpush.bf16.msra.mxu0 0
  %332 = vmatpush.bf16.msra.mxu0 0
  %333 = vmatpush.bf16.msra.mxu0 0
  %334 = vmatpush.bf16.msra.mxu0 0
  %335 = vmatpush.bf16.msra.mxu0 %v184
  %336 = vmatpush.bf16.msra.mxu0 %v182
  %337 = vmatpush.bf16.msra.mxu0 %v180
  %338 = vmatpush.bf16.msra.mxu0 %v178
  %339 = vmatmul.bf16.gmra.mxu0 %v195
  %v340 = vpop.f32.mrf.mxu0
  %v341 = vadd.f32 %v70, %v340
  %v342 = vpop.f32.mrf.mxu0
  %v343 = vadd.f32 %v70, %v342
  %344 = vmatmul.bf16.gmra.mxu0 %v198
  %v345 = vpop.f32.mrf.mxu0
  %v346 = vadd.f32 %v70, %v345
  %v347 = vpop.f32.mrf.mxu0
  %v348 = vadd.f32 %v70, %v347
  %349 = vmatmul.bf16.gmra.mxu0 %v201
  %v350 = vpop.f32.mrf.mxu0
  %v351 = vadd.f32 %v70, %v350
  %v352 = vpop.f32.mrf.mxu0
  %v353 = vadd.f32 %v70, %v352
  %354 = vmatmul.bf16.gmra.mxu0 %v204
  %v355 = vpop.f32.mrf.mxu0
  %v356 = vadd.f32 %v70, %v355
  %v357 = vpop.f32.mrf.mxu0
  %v358 = vadd.f32 %v70, %v357
  %359 = vmatmul.bf16.gmra.mxu0 %v207
  %v360 = vpop.f32.mrf.mxu0
  %v361 = vadd.f32 %v70, %v360
  %v362 = vpop.f32.mrf.mxu0
  %v363 = vadd.f32 %v70, %v362
  %364 = vmatmul.bf16.gmra.mxu0 %v210
  %v365 = vpop.f32.mrf.mxu0
  %v366 = vadd.f32 %v70, %v365
  %v367 = vpop.f32.mrf.mxu0
  %v368 = vadd.f32 %v70, %v367
  %369 = vmatmul.bf16.gmra.mxu0 %v213
  %v370 = vpop.f32.mrf.mxu0
  %v371 = vadd.f32 %v70, %v370
  %v372 = vpop.f32.mrf.mxu0
  %v373 = vadd.f32 %v70, %v372
  %374 = vmatmul.bf16.gmra.mxu0 %v216
  %v375 = vpop.f32.mrf.mxu0
  %v376 = vadd.f32 %v70, %v375
  %v377 = vpop.f32.mrf.mxu0
  %v378 = vadd.f32 %v70, %v377
  %379 = vmatmul.bf16.gmra.mxu0 %v219
  %v380 = vpop.f32.mrf.mxu0
  %v381 = vadd.f32 %v70, %v380
  %v382 = vpop.f32.mrf.mxu0
  %v383 = vadd.f32 %v70, %v382
  %384 = vmatmul.bf16.gmra.mxu0 %v222
  %v385 = vpop.f32.mrf.mxu0
  %v386 = vadd.f32 %v70, %v385
  %v387 = vpop.f32.mrf.mxu0
  %v388 = vadd.f32 %v70, %v387
  %389 = vmatmul.bf16.gmra.mxu0 %v225
  %v390 = vpop.f32.mrf.mxu0
  %v391 = vadd.f32 %v70, %v390
  %v392 = vpop.f32.mrf.mxu0
  %v393 = vadd.f32 %v70, %v392
  %394 = vmatmul.bf16.gmra.mxu0 %v228
  %v395 = vpop.f32.mrf.mxu0
  %v396 = vadd.f32 %v70, %v395
  %v397 = vpop.f32.mrf.mxu0
  %v398 = vadd.f32 %v70, %v397
  %399 = vmatmul.bf16.gmra.mxu0 %v231
  %v400 = vpop.f32.mrf.mxu0
  %v401 = vadd.f32 %v70, %v400
  %v402 = vpop.f32.mrf.mxu0
  %v403 = vadd.f32 %v70, %v402
  %404 = vmatmul.bf16.gmra.mxu0 %v234
  %v405 = vpop.f32.mrf.mxu0
  %v406 = vadd.f32 %v70, %v405
  %v407 = vpop.f32.mrf.mxu0
  %v408 = vadd.f32 %v70, %v407
  %409 = vmatmul.bf16.gmra.mxu0 %v237
  %v410 = vpop.f32.mrf.mxu0
  %v411 = vadd.f32 %v70, %v410
  %v412 = vpop.f32.mrf.mxu0
  %v413 = vadd.f32 %v70, %v412
  %414 = vmatmul.bf16.gmra.mxu0 %v240
  %v415 = vpop.f32.mrf.mxu0
  %v416 = vadd.f32 %v70, %v415
  %v417 = vpop.f32.mrf.mxu0
  %v418 = vadd.f32 %v70, %v417
  %419 = vdwg.mxu0
  %v420 = vmax.f32 %v252, 0.0
  %v421 = vmax.f32 %v341, 0.0
  %v422 = vmax.f32 %v254, 0.0
  %v423 = vmax.f32 %v343, 0.0
  %v424 = vmax.f32 %v257, 0.0
  %v425 = vmax.f32 %v346, 0.0
  %v426 = vmax.f32 %v259, 0.0
  %v427 = vmax.f32 %v348, 0.0
  %v428 = vmax.f32 %v262, 0.0
  %v429 = vmax.f32 %v351, 0.0
  %v430 = vmax.f32 %v264, 0.0
  %v431 = vmax.f32 %v353, 0.0
  %v432 = vmax.f32 %v267, 0.0
  %v433 = vmax.f32 %v356, 0.0
  %v434 = vmax.f32 %v269, 0.0
  %v435 = vmax.f32 %v358, 0.0
  %v436 = vmax.f32 %v272, 0.0
  %v437 = vmax.f32 %v361, 0.0
  %v438 = vmax.f32 %v274, 0.0
  %v439 = vmax.f32 %v363, 0.0
  %v440 = vmax.f32 %v277, 0.0
  %v441 = vmax.f32 %v366, 0.0
  %v442 = vmax.f32 %v279, 0.0
  %v443 = vmax.f32 %v368, 0.0
  %v444 = vmax.f32 %v282, 0.0
  %v445 = vmax.f32 %v371, 0.0
  %v446 = vmax.f32 %v284, 0.0
  %v447 = vmax.f32 %v373, 0.0
  %v448 = vmax.f32 %v287, 0.0
  %v449 = vmax.f32 %v376, 0.0
  %v450 = vmax.f32 %v289, 0.0
  %v451 = vmax.f32 %v378, 0.0
  %v452 = vmax.f32 %v292, 0.0
  %v453 = vmax.f32 %v381, 0.0
  %v454 = vmax.f32 %v294, 0.0
  %v455 = vmax.f32 %v383, 0.0
  %v456 = vmax.f32 %v297, 0.0
  %v457 = vmax.f32 %v386, 0.0
  %v458 = vmax.f32 %v299, 0.0
  %v459 = vmax.f32 %v388, 0.0
  %v460 = vmax.f32 %v302, 0.0
  %v461 = vmax.f32 %v391, 0.0
  %v462 = vmax.f32 %v304, 0.0
  %v463 = vmax.f32 %v393, 0.0
  %v464 = vmax.f32 %v307, 0.0
  %v465 = vmax.f32 %v396, 0.0
  %v466 = vmax.f32 %v309, 0.0
  %v467 = vmax.f32 %v398, 0.0
  %v468 = vmax.f32 %v312, 0.0
  %v469 = vmax.f32 %v401, 0.0
  %v470 = vmax.f32 %v314, 0.0
  %v471 = vmax.f32 %v403, 0.0
  %v472 = vmax.f32 %v317, 0.0
  %v473 = vmax.f32 %v406, 0.0
  %v474 = vmax.f32 %v319, 0.0
  %v475 = vmax.f32 %v408, 0.0
  %v476 = vmax.f32 %v322, 0.0
  %v477 = vmax.f32 %v411, 0.0
  %v478 = vmax.f32 %v324, 0.0
  %v479 = vmax.f32 %v413, 0.0
  %v480 = vmax.f32 %v327, 0.0
  %v481 = vmax.f32 %v416, 0.0
  %v482 = vmax.f32 %v329, 0.0
  %v483 = vmax.f32 %v418, 0.0
  %v484 = vpack.c.bf16 %v422, %v420
  %v485 = vpack.c.bf16 %v423, %v421
  %v486 = vpack.c.bf16 %v426, %v424
  %v487 = vpack.c.bf16 %v427, %v425
  %v488 = vpack.c.bf16 %v430, %v428
  %v489 = vpack.c.bf16 %v431, %v429
  %v490 = vpack.c.bf16 %v434, %v432
  %v491 = vpack.c.bf16 %v435, %v433
  %v492 = vpack.c.bf16 %v438, %v436
  %v493 = vpack.c.bf16 %v439, %v437
  %v494 = vpack.c.bf16 %v442, %v440
  %v495 = vpack.c.bf16 %v443, %v441
  %v496 = vpack.c.bf16 %v446, %v444
  %v497 = vpack.c.bf16 %v447, %v445
  %v498 = vpack.c.bf16 %v450, %v448
  %v499 = vpack.c.bf16 %v451, %v449
  %v500 = vpack.c.bf16 %v454, %v452
  %v501 = vpack.c.bf16 %v455, %v453
  %v502 = vpack.c.bf16 %v458, %v456
  %v503 = vpack.c.bf16 %v459, %v457
  %v504 = vpack.c.bf16 %v462, %v460
  %v505 = vpack.c.bf16 %v463, %v461
  %v506 = vpack.c.bf16 %v466, %v464
  %v507 = vpack.c.bf16 %v467, %v465
  %v508 = vpack.c.bf16 %v470, %v468
  %v509 = vpack.c.bf16 %v471, %v469
  %v510 = vpack.c.bf16 %v474, %v472
  %v511 = vpack.c.bf16 %v475, %v473
  %v512 = vpack.c.bf16 %v478, %v476
  %v513 = vpack.c.bf16 %v479, %v477
  %v514 = vpack.c.bf16 %v482, %v480
  %v515 = vpack.c.bf16 %v483, %v481
  %v516 = vld [vmem:[%s3] sm:$0xff]
  %v517 = vld [vmem:[%s3 + $0x8] sm:$0xff]
  %v518 = vld [vmem:[%s3 + $0x10] sm:$0xff]
  %v519 = vld [vmem:[%s3 + $0x18] sm:$0xff]
  %v520 = vld [vmem:[%s3 + $0x20] sm:$0xff]
  %v521 = vld [vmem:[%s3 + $0x28] sm:$0xff]
  %v522 = vld [vmem:[%s3 + $0x30] sm:$0xff]
  %v523 = vld [vmem:[%s3 + $0x38] sm:$0xff]
  %v524 = vld [vmem:[%s3 + $0x40] sm:$0xff]
  %v525 = vld [vmem:[%s3 + $0x48] sm:$0xff]
  %v526 = vld [vmem:[%s3 + $0x50] sm:$0xff]
  %v527 = vld [vmem:[%s3 + $0x58] sm:$0xff]
  %v528 = vld [vmem:[%s3 + $0x60] sm:$0xff]
  %v529 = vld [vmem:[%s3 + $0x68] sm:$0xff]
  %v530 = vld [vmem:[%s3 + $0x70] sm:$0xff]
  %v531 = vld [vmem:[%s3 + $0x78] sm:$0xff]
  %v532 = vld [vmem:[%s3 + $0x80] sm:$0xff]
  %v533 = vld [vmem:[%s3 + $0x88] sm:$0xff]
  %v534 = vld [vmem:[%s3 + $0x90] sm:$0xff]
  %v535 = vld [vmem:[%s3 + $0x98] sm:$0xff]
  %v536 = vld [vmem:[%s3 + $0xa0] sm:$0xff]
  %v537 = vld [vmem:[%s3 + $0xa8] sm:$0xff]
  %v538 = vld [vmem:[%s3 + $0xb0] sm:$0xff]
  %v539 = vld [vmem:[%s3 + $0xb8] sm:$0xff]
  %v540 = vld [vmem:[%s3 + $0xc0] sm:$0xff]
  %v541 = vld [vmem:[%s3 + $0xc8] sm:$0xff]
  %v542 = vld [vmem:[%s3 + $0xd0] sm:$0xff]
  %v543 = vld [vmem:[%s3 + $0xd8] sm:$0xff]
  %v544 = vld [vmem:[%s3 + $0xe0] sm:$0xff]
  %v545 = vld [vmem:[%s3 + $0xe8] sm:$0xff]
  %v546 = vld [vmem:[%s3 + $0xf0] sm:$0xff]
  %v547 = vld [vmem:[%s3 + $0xf8] sm:$0xff]
  %v548 = vld [vmem:[%s4] sm:$0x3]
  %v550 = vperm.slane %v548, 0
  %v551 = vperm.slane %v548, 1
  %v586 = vunpack.c.l.b16 %v516
  %v587 = vunpack.c.h.b16 %v516
  %v588 = vunpack.c.l.b16 %v517
  %v589 = vunpack.c.h.b16 %v517
  %v590 = vunpack.c.l.b16 %v518
  %v591 = vunpack.c.h.b16 %v518
  %v592 = vunpack.c.l.b16 %v519
  %v593 = vunpack.c.h.b16 %v519
  %v594 = vunpack.c.l.b16 %v520
  %v595 = vunpack.c.h.b16 %v520
  %v596 = vunpack.c.l.b16 %v521
  %v597 = vunpack.c.h.b16 %v521
  %v598 = vunpack.c.l.b16 %v522
  %v599 = vunpack.c.h.b16 %v522
  %v600 = vunpack.c.l.b16 %v523
  %v601 = vunpack.c.h.b16 %v523
  %v602 = vunpack.c.l.b16 %v524
  %v603 = vunpack.c.h.b16 %v524
  %v604 = vunpack.c.l.b16 %v525
  %v605 = vunpack.c.h.b16 %v525
  %v606 = vunpack.c.l.b16 %v526
  %v607 = vunpack.c.h.b16 %v526
  %v608 = vunpack.c.l.b16 %v527
  %v609 = vunpack.c.h.b16 %v527
  %v610 = vunpack.c.l.b16 %v528
  %v611 = vunpack.c.h.b16 %v528
  %v612 = vunpack.c.l.b16 %v529
  %v613 = vunpack.c.h.b16 %v529
  %v614 = vunpack.c.l.b16 %v530
  %v615 = vunpack.c.h.b16 %v530
  %v616 = vunpack.c.l.b16 %v531
  %v617 = vunpack.c.h.b16 %v531
  %v618 = vunpack.c.l.b16 %v532
  %v619 = vunpack.c.h.b16 %v532
  %v620 = vunpack.c.l.b16 %v533
  %v621 = vunpack.c.h.b16 %v533
  %v622 = vunpack.c.l.b16 %v534
  %v623 = vunpack.c.h.b16 %v534
  %v624 = vunpack.c.l.b16 %v535
  %v625 = vunpack.c.h.b16 %v535
  %v626 = vunpack.c.l.b16 %v536
  %v627 = vunpack.c.h.b16 %v536
  %v628 = vunpack.c.l.b16 %v537
  %v629 = vunpack.c.h.b16 %v537
  %v630 = vunpack.c.l.b16 %v538
  %v631 = vunpack.c.h.b16 %v538
  %v632 = vunpack.c.l.b16 %v539
  %v633 = vunpack.c.h.b16 %v539
  %v634 = vunpack.c.l.b16 %v540
  %v635 = vunpack.c.h.b16 %v540
  %v636 = vunpack.c.l.b16 %v541
  %v637 = vunpack.c.h.b16 %v541
  %v638 = vunpack.c.l.b16 %v542
  %v639 = vunpack.c.h.b16 %v542
  %v640 = vunpack.c.l.b16 %v543
  %v641 = vunpack.c.h.b16 %v543
  %v642 = vunpack.c.l.b16 %v544
  %v643 = vunpack.c.h.b16 %v544
  %v644 = vunpack.c.l.b16 %v545
  %v645 = vunpack.c.h.b16 %v545
  %v646 = vunpack.c.l.b16 %v546
  %v647 = vunpack.c.h.b16 %v546
  %v648 = vunpack.c.l.b16 %v547
  %v649 = vunpack.c.h.b16 %v547
  %v650 = vpack.c.b16 %v588, %v586
  %v651 = vpack.c.b16 %v589, %v587
  %v652 = vpack.c.b16 %v592, %v590
  %v653 = vpack.c.b16 %v593, %v591
  %v654 = vpack.c.b16 %v596, %v594
  %v655 = vpack.c.b16 %v597, %v595
  %v656 = vpack.c.b16 %v600, %v598
  %v657 = vpack.c.b16 %v601, %v599
  %v658 = vpack.c.b16 %v604, %v602
  %v659 = vpack.c.b16 %v605, %v603
  %v660 = vpack.c.b16 %v608, %v606
  %v661 = vpack.c.b16 %v609, %v607
  %v662 = vpack.c.b16 %v612, %v610
  %v663 = vpack.c.b16 %v613, %v611
  %v664 = vpack.c.b16 %v616, %v614
  %v665 = vpack.c.b16 %v617, %v615
  %v666 = vpack.c.b16 %v620, %v618
  %v667 = vpack.c.b16 %v621, %v619
  %v668 = vpack.c.b16 %v624, %v622
  %v669 = vpack.c.b16 %v625, %v623
  %v670 = vpack.c.b16 %v628, %v626
  %v671 = vpack.c.b16 %v629, %v627
  %v672 = vpack.c.b16 %v632, %v630
  %v673 = vpack.c.b16 %v633, %v631
  %v674 = vpack.c.b16 %v636, %v634
  %v675 = vpack.c.b16 %v637, %v635
  %v676 = vpack.c.b16 %v640, %v638
  %v677 = vpack.c.b16 %v641, %v639
  %v678 = vpack.c.b16 %v644, %v642
  %v679 = vpack.c.b16 %v645, %v643
  %v680 = vpack.c.b16 %v648, %v646
  %v681 = vpack.c.b16 %v649, %v647
  %714 = vmatpush.bf16.msra.mxu0 %v664
  %715 = vmatpush.bf16.msra.mxu0 %v662
  %716 = vmatpush.bf16.msra.mxu0 %v660
  %717 = vmatpush.bf16.msra.mxu0 %v658
  %718 = vmatpush.bf16.msra.mxu0 %v656
  %719 = vmatpush.bf16.msra.mxu0 %v654
  %720 = vmatpush.bf16.msra.mxu0 %v652
  %721 = vmatpush.bf16.msra.mxu0 %v650
  %722 = vmatmul.bf16.gmra.mxu0 %v484
  %v723 = vpop.f32.mrf.mxu0
  %v724 = vadd.f32 %v550, %v723
  %v725 = vpop.f32.mrf.mxu0
  %v726 = vadd.f32 %v550, %v725
  %727 = vmatmul.bf16.gmra.mxu0 %v486
  %v728 = vpop.f32.mrf.mxu0
  %v729 = vadd.f32 %v550, %v728
  %v730 = vpop.f32.mrf.mxu0
  %v731 = vadd.f32 %v550, %v730
  %732 = vmatmul.bf16.gmra.mxu0 %v488
  %v733 = vpop.f32.mrf.mxu0
  %v734 = vadd.f32 %v550, %v733
  %v735 = vpop.f32.mrf.mxu0
  %v736 = vadd.f32 %v550, %v735
  %737 = vmatmul.bf16.gmra.mxu0 %v490
  %v738 = vpop.f32.mrf.mxu0
  %v739 = vadd.f32 %v550, %v738
  %v740 = vpop.f32.mrf.mxu0
  %v741 = vadd.f32 %v550, %v740
  %742 = vmatmul.bf16.gmra.mxu0 %v492
  %v743 = vpop.f32.mrf.mxu0
  %v744 = vadd.f32 %v550, %v743
  %v745 = vpop.f32.mrf.mxu0
  %v746 = vadd.f32 %v550, %v745
  %747 = vmatmul.bf16.gmra.mxu0 %v494
  %v748 = vpop.f32.mrf.mxu0
  %v749 = vadd.f32 %v550, %v748
  %v750 = vpop.f32.mrf.mxu0
  %v751 = vadd.f32 %v550, %v750
  %752 = vmatmul.bf16.gmra.mxu0 %v496
  %v753 = vpop.f32.mrf.mxu0
  %v754 = vadd.f32 %v550, %v753
  %v755 = vpop.f32.mrf.mxu0
  %v756 = vadd.f32 %v550, %v755
  %757 = vmatmul.bf16.gmra.mxu0 %v498
  %v758 = vpop.f32.mrf.mxu0
  %v759 = vadd.f32 %v550, %v758
  %v760 = vpop.f32.mrf.mxu0
  %v761 = vadd.f32 %v550, %v760
  %762 = vmatmul.bf16.gmra.mxu0 %v500
  %v763 = vpop.f32.mrf.mxu0
  %v764 = vadd.f32 %v550, %v763
  %v765 = vpop.f32.mrf.mxu0
  %v766 = vadd.f32 %v550, %v765
  %767 = vmatmul.bf16.gmra.mxu0 %v502
  %v768 = vpop.f32.mrf.mxu0
  %v769 = vadd.f32 %v550, %v768
  %v770 = vpop.f32.mrf.mxu0
  %v771 = vadd.f32 %v550, %v770
  %772 = vmatmul.bf16.gmra.mxu0 %v504
  %v773 = vpop.f32.mrf.mxu0
  %v774 = vadd.f32 %v550, %v773
  %v775 = vpop.f32.mrf.mxu0
  %v776 = vadd.f32 %v550, %v775
  %777 = vmatmul.bf16.gmra.mxu0 %v506
  %v778 = vpop.f32.mrf.mxu0
  %v779 = vadd.f32 %v550, %v778
  %v780 = vpop.f32.mrf.mxu0
  %v781 = vadd.f32 %v550, %v780
  %782 = vmatmul.bf16.gmra.mxu0 %v508
  %v783 = vpop.f32.mrf.mxu0
  %v784 = vadd.f32 %v550, %v783
  %v785 = vpop.f32.mrf.mxu0
  %v786 = vadd.f32 %v550, %v785
  %787 = vmatmul.bf16.gmra.mxu0 %v510
  %v788 = vpop.f32.mrf.mxu0
  %v789 = vadd.f32 %v550, %v788
  %v790 = vpop.f32.mrf.mxu0
  %v791 = vadd.f32 %v550, %v790
  %792 = vmatmul.bf16.gmra.mxu0 %v512
  %v793 = vpop.f32.mrf.mxu0
  %v794 = vadd.f32 %v550, %v793
  %v795 = vpop.f32.mrf.mxu0
  %v796 = vadd.f32 %v550, %v795
  %797 = vmatmul.bf16.gmra.mxu0 %v514
  %v798 = vpop.f32.mrf.mxu0
  %v799 = vadd.f32 %v550, %v798
  %v800 = vpop.f32.mrf.mxu0
  %v801 = vadd.f32 %v550, %v800
  %802 = vdwg.mxu0
  %803 = vmatpush.bf16.msra.mxu0 %v680
  %804 = vmatpush.bf16.msra.mxu0 %v678
  %805 = vmatpush.bf16.msra.mxu0 %v676
  %806 = vmatpush.bf16.msra.mxu0 %v674
  %807 = vmatpush.bf16.msra.mxu0 %v672
  %808 = vmatpush.bf16.msra.mxu0 %v670
  %809 = vmatpush.bf16.msra.mxu0 %v668
  %810 = vmatpush.bf16.msra.mxu0 %v666
  %811 = vmatmul.bf16.gmra.mxu0 %v485
  %v812 = vpop.f32.mrf.mxu0
  %v813 = vadd.f32 %v724, %v812
  %v814 = vpop.f32.mrf.mxu0
  %v815 = vadd.f32 %v726, %v814
  %816 = vmatmul.bf16.gmra.mxu0 %v487
  %v817 = vpop.f32.mrf.mxu0
  %v818 = vadd.f32 %v729, %v817
  %v819 = vpop.f32.mrf.mxu0
  %v820 = vadd.f32 %v731, %v819
  %821 = vmatmul.bf16.gmra.mxu0 %v489
  %v822 = vpop.f32.mrf.mxu0
  %v823 = vadd.f32 %v734, %v822
  %v824 = vpop.f32.mrf.mxu0
  %v825 = vadd.f32 %v736, %v824
  %826 = vmatmul.bf16.gmra.mxu0 %v491
  %v827 = vpop.f32.mrf.mxu0
  %v828 = vadd.f32 %v739, %v827
  %v829 = vpop.f32.mrf.mxu0
  %v830 = vadd.f32 %v741, %v829
  %831 = vmatmul.bf16.gmra.mxu0 %v493
  %v832 = vpop.f32.mrf.mxu0
  %v833 = vadd.f32 %v744, %v832
  %v834 = vpop.f32.mrf.mxu0
  %v835 = vadd.f32 %v746, %v834
  %836 = vmatmul.bf16.gmra.mxu0 %v495
  %v837 = vpop.f32.mrf.mxu0
  %v838 = vadd.f32 %v749, %v837
  %v839 = vpop.f32.mrf.mxu0
  %v840 = vadd.f32 %v751, %v839
  %841 = vmatmul.bf16.gmra.mxu0 %v497
  %v842 = vpop.f32.mrf.mxu0
  %v843 = vadd.f32 %v754, %v842
  %v844 = vpop.f32.mrf.mxu0
  %v845 = vadd.f32 %v756, %v844
  %846 = vmatmul.bf16.gmra.mxu0 %v499
  %v847 = vpop.f32.mrf.mxu0
  %v848 = vadd.f32 %v759, %v847
  %v849 = vpop.f32.mrf.mxu0
  %v850 = vadd.f32 %v761, %v849
  %851 = vmatmul.bf16.gmra.mxu0 %v501
  %v852 = vpop.f32.mrf.mxu0
  %v853 = vadd.f32 %v764, %v852
  %v854 = vpop.f32.mrf.mxu0
  %v855 = vadd.f32 %v766, %v854
  %856 = vmatmul.bf16.gmra.mxu0 %v503
  %v857 = vpop.f32.mrf.mxu0
  %v858 = vadd.f32 %v769, %v857
  %v859 = vpop.f32.mrf.mxu0
  %v860 = vadd.f32 %v771, %v859
  %861 = vmatmul.bf16.gmra.mxu0 %v505
  %v862 = vpop.f32.mrf.mxu0
  %v863 = vadd.f32 %v774, %v862
  %v864 = vpop.f32.mrf.mxu0
  %v865 = vadd.f32 %v776, %v864
  %866 = vmatmul.bf16.gmra.mxu0 %v507
  %v867 = vpop.f32.mrf.mxu0
  %v868 = vadd.f32 %v779, %v867
  %v869 = vpop.f32.mrf.mxu0
  %v870 = vadd.f32 %v781, %v869
  %871 = vmatmul.bf16.gmra.mxu0 %v509
  %v872 = vpop.f32.mrf.mxu0
  %v873 = vadd.f32 %v784, %v872
  %v874 = vpop.f32.mrf.mxu0
  %v875 = vadd.f32 %v786, %v874
  %876 = vmatmul.bf16.gmra.mxu0 %v511
  %v877 = vpop.f32.mrf.mxu0
  %v878 = vadd.f32 %v789, %v877
  %v879 = vpop.f32.mrf.mxu0
  %v880 = vadd.f32 %v791, %v879
  %881 = vmatmul.bf16.gmra.mxu0 %v513
  %v882 = vpop.f32.mrf.mxu0
  %v883 = vadd.f32 %v794, %v882
  %v884 = vpop.f32.mrf.mxu0
  %v885 = vadd.f32 %v796, %v884
  %886 = vmatmul.bf16.gmra.mxu0 %v515
  %v887 = vpop.f32.mrf.mxu0
  %v888 = vadd.f32 %v799, %v887
  %v889 = vpop.f32.mrf.mxu0
  %v890 = vadd.f32 %v801, %v889
  %891 = vdwg.mxu0
  %892 = vmatpush.bf16.msra.mxu0 %v665
  %893 = vmatpush.bf16.msra.mxu0 %v663
  %894 = vmatpush.bf16.msra.mxu0 %v661
  %895 = vmatpush.bf16.msra.mxu0 %v659
  %896 = vmatpush.bf16.msra.mxu0 %v657
  %897 = vmatpush.bf16.msra.mxu0 %v655
  %898 = vmatpush.bf16.msra.mxu0 %v653
  %899 = vmatpush.bf16.msra.mxu0 %v651
  %900 = vmatmul.bf16.gmra.mxu0 %v484
  %v901 = vpop.f32.mrf.mxu0
  %v902 = vadd.f32 %v551, %v901
  %v903 = vpop.f32.mrf.mxu0
  %v904 = vadd.f32 %v551, %v903
  %905 = vmatmul.bf16.gmra.mxu0 %v486
  %v906 = vpop.f32.mrf.mxu0
  %v907 = vadd.f32 %v551, %v906
  %v908 = vpop.f32.mrf.mxu0
  %v909 = vadd.f32 %v551, %v908
  %910 = vmatmul.bf16.gmra.mxu0 %v488
  %v911 = vpop.f32.mrf.mxu0
  %v912 = vadd.f32 %v551, %v911
  %v913 = vpop.f32.mrf.mxu0
  %v914 = vadd.f32 %v551, %v913
  %915 = vmatmul.bf16.gmra.mxu0 %v490
  %v916 = vpop.f32.mrf.mxu0
  %v917 = vadd.f32 %v551, %v916
  %v918 = vpop.f32.mrf.mxu0
  %v919 = vadd.f32 %v551, %v918
  %920 = vmatmul.bf16.gmra.mxu0 %v492
  %v921 = vpop.f32.mrf.mxu0
  %v922 = vadd.f32 %v551, %v921
  %v923 = vpop.f32.mrf.mxu0
  %v924 = vadd.f32 %v551, %v923
  %925 = vmatmul.bf16.gmra.mxu0 %v494
  %v926 = vpop.f32.mrf.mxu0
  %v927 = vadd.f32 %v551, %v926
  %v928 = vpop.f32.mrf.mxu0
  %v929 = vadd.f32 %v551, %v928
  %930 = vmatmul.bf16.gmra.mxu0 %v496
  %v931 = vpop.f32.mrf.mxu0
  %v932 = vadd.f32 %v551, %v931
  %v933 = vpop.f32.mrf.mxu0
  %v934 = vadd.f32 %v551, %v933
  %935 = vmatmul.bf16.gmra.mxu0 %v498
  %v936 = vpop.f32.mrf.mxu0
  %v937 = vadd.f32 %v551, %v936
  %v938 = vpop.f32.mrf.mxu0
  %v939 = vadd.f32 %v551, %v938
  %940 = vmatmul.bf16.gmra.mxu0 %v500
  %v941 = vpop.f32.mrf.mxu0
  %v942 = vadd.f32 %v551, %v941
  %v943 = vpop.f32.mrf.mxu0
  %v944 = vadd.f32 %v551, %v943
  %945 = vmatmul.bf16.gmra.mxu0 %v502
  %v946 = vpop.f32.mrf.mxu0
  %v947 = vadd.f32 %v551, %v946
  %v948 = vpop.f32.mrf.mxu0
  %v949 = vadd.f32 %v551, %v948
  %950 = vmatmul.bf16.gmra.mxu0 %v504
  %v951 = vpop.f32.mrf.mxu0
  %v952 = vadd.f32 %v551, %v951
  %v953 = vpop.f32.mrf.mxu0
  %v954 = vadd.f32 %v551, %v953
  %955 = vmatmul.bf16.gmra.mxu0 %v506
  %v956 = vpop.f32.mrf.mxu0
  %v957 = vadd.f32 %v551, %v956
  %v958 = vpop.f32.mrf.mxu0
  %v959 = vadd.f32 %v551, %v958
  %960 = vmatmul.bf16.gmra.mxu0 %v508
  %v961 = vpop.f32.mrf.mxu0
  %v962 = vadd.f32 %v551, %v961
  %v963 = vpop.f32.mrf.mxu0
  %v964 = vadd.f32 %v551, %v963
  %965 = vmatmul.bf16.gmra.mxu0 %v510
  %v966 = vpop.f32.mrf.mxu0
  %v967 = vadd.f32 %v551, %v966
  %v968 = vpop.f32.mrf.mxu0
  %v969 = vadd.f32 %v551, %v968
  %970 = vmatmul.bf16.gmra.mxu0 %v512
  %v971 = vpop.f32.mrf.mxu0
  %v972 = vadd.f32 %v551, %v971
  %v973 = vpop.f32.mrf.mxu0
  %v974 = vadd.f32 %v551, %v973
  %975 = vmatmul.bf16.gmra.mxu0 %v514
  %v976 = vpop.f32.mrf.mxu0
  %v977 = vadd.f32 %v551, %v976
  %v978 = vpop.f32.mrf.mxu0
  %v979 = vadd.f32 %v551, %v978
  %980 = vdwg.mxu0
  %981 = vmatpush.bf16.msra.mxu0 %v681
  %982 = vmatpush.bf16.msra.mxu0 %v679
  %983 = vmatpush.bf16.msra.mxu0 %v677
  %984 = vmatpush.bf16.msra.mxu0 %v675
  %985 = vmatpush.bf16.msra.mxu0 %v673
  %986 = vmatpush.bf16.msra.mxu0 %v671
  %987 = vmatpush.bf16.msra.mxu0 %v669
  %988 = vmatpush.bf16.msra.mxu0 %v667
  %989 = vmatmul.bf16.gmra.mxu0 %v485
  %v990 = vpop.f32.mrf.mxu0
  %v991 = vadd.f32 %v902, %v990
  %v992 = vpop.f32.mrf.mxu0
  %v993 = vadd.f32 %v904, %v992
  %994 = vmatmul.bf16.gmra.mxu0 %v487
  %v995 = vpop.f32.mrf.mxu0
  %v996 = vadd.f32 %v907, %v995
  %v997 = vpop.f32.mrf.mxu0
  %v998 = vadd.f32 %v909, %v997
  %999 = vmatmul.bf16.gmra.mxu0 %v489
  %v1000 = vpop.f32.mrf.mxu0
  %v1001 = vadd.f32 %v912, %v1000
  %v1002 = vpop.f32.mrf.mxu0
  %v1003 = vadd.f32 %v914, %v1002
  %1004 = vmatmul.bf16.gmra.mxu0 %v491
  %v1005 = vpop.f32.mrf.mxu0
  %v1006 = vadd.f32 %v917, %v1005
  %v1007 = vpop.f32.mrf.mxu0
  %v1008 = vadd.f32 %v919, %v1007
  %1009 = vmatmul.bf16.gmra.mxu0 %v493
  %v1010 = vpop.f32.mrf.mxu0
  %v1011 = vadd.f32 %v922, %v1010
  %v1012 = vpop.f32.mrf.mxu0
  %v1013 = vadd.f32 %v924, %v1012
  %1014 = vmatmul.bf16.gmra.mxu0 %v495
  %v1015 = vpop.f32.mrf.mxu0
  %v1016 = vadd.f32 %v927, %v1015
  %v1017 = vpop.f32.mrf.mxu0
  %v1018 = vadd.f32 %v929, %v1017
  %1019 = vmatmul.bf16.gmra.mxu0 %v497
  %v1020 = vpop.f32.mrf.mxu0
  %v1021 = vadd.f32 %v932, %v1020
  %v1022 = vpop.f32.mrf.mxu0
  %v1023 = vadd.f32 %v934, %v1022
  %1024 = vmatmul.bf16.gmra.mxu0 %v499
  %v1025 = vpop.f32.mrf.mxu0
  %v1026 = vadd.f32 %v937, %v1025
  %v1027 = vpop.f32.mrf.mxu0
  %v1028 = vadd.f32 %v939, %v1027
  %1029 = vmatmul.bf16.gmra.mxu0 %v501
  %v1030 = vpop.f32.mrf.mxu0
  %v1031 = vadd.f32 %v942, %v1030
  %v1032 = vpop.f32.mrf.mxu0
  %v1033 = vadd.f32 %v944, %v1032
  %1034 = vmatmul.bf16.gmra.mxu0 %v503
  %v1035 = vpop.f32.mrf.mxu0
  %v1036 = vadd.f32 %v947, %v1035
  %v1037 = vpop.f32.mrf.mxu0
  %v1038 = vadd.f32 %v949, %v1037
  %1039 = vmatmul.bf16.gmra.mxu0 %v505
  %v1040 = vpop.f32.mrf.mxu0
  %v1041 = vadd.f32 %v952, %v1040
  %v1042 = vpop.f32.mrf.mxu0
  %v1043 = vadd.f32 %v954, %v1042
  %1044 = vmatmul.bf16.gmra.mxu0 %v507
  %v1045 = vpop.f32.mrf.mxu0
  %v1046 = vadd.f32 %v957, %v1045
  %v1047 = vpop.f32.mrf.mxu0
  %v1048 = vadd.f32 %v959, %v1047
  %1049 = vmatmul.bf16.gmra.mxu0 %v509
  %v1050 = vpop.f32.mrf.mxu0
  %v1051 = vadd.f32 %v962, %v1050
  %v1052 = vpop.f32.mrf.mxu0
  %v1053 = vadd.f32 %v964, %v1052
  %1054 = vmatmul.bf16.gmra.mxu0 %v511
  %v1055 = vpop.f32.mrf.mxu0
  %v1056 = vadd.f32 %v967, %v1055
  %v1057 = vpop.f32.mrf.mxu0
  %v1058 = vadd.f32 %v969, %v1057
  %1059 = vmatmul.bf16.gmra.mxu0 %v513
  %v1060 = vpop.f32.mrf.mxu0
  %v1061 = vadd.f32 %v972, %v1060
  %v1062 = vpop.f32.mrf.mxu0
  %v1063 = vadd.f32 %v974, %v1062
  %1064 = vmatmul.bf16.gmra.mxu0 %v515
  %v1065 = vpop.f32.mrf.mxu0
  %v1066 = vadd.f32 %v977, %v1065
  %v1067 = vpop.f32.mrf.mxu0
  %v1068 = vadd.f32 %v979, %v1067
  %1069 = vdwg.mxu0
  %v1070 = vmax.f32 %v813, 0.0
  %v1071 = vmax.f32 %v991, 0.0
  %v1072 = vmax.f32 %v815, 0.0
  %v1073 = vmax.f32 %v993, 0.0
  %v1074 = vmax.f32 %v818, 0.0
  %v1075 = vmax.f32 %v996, 0.0
  %v1076 = vmax.f32 %v820, 0.0
  %v1077 = vmax.f32 %v998, 0.0
  %v1078 = vmax.f32 %v823, 0.0
  %v1079 = vmax.f32 %v1001, 0.0
  %v1080 = vmax.f32 %v825, 0.0
  %v1081 = vmax.f32 %v1003, 0.0
  %v1082 = vmax.f32 %v828, 0.0
  %v1083 = vmax.f32 %v1006, 0.0
  %v1084 = vmax.f32 %v830, 0.0
  %v1085 = vmax.f32 %v1008, 0.0
  %v1086 = vmax.f32 %v833, 0.0
  %v1087 = vmax.f32 %v1011, 0.0
  %v1088 = vmax.f32 %v835, 0.0
  %v1089 = vmax.f32 %v1013, 0.0
  %v1090 = vmax.f32 %v838, 0.0
  %v1091 = vmax.f32 %v1016, 0.0
  %v1092 = vmax.f32 %v840, 0.0
  %v1093 = vmax.f32 %v1018, 0.0
  %v1094 = vmax.f32 %v843, 0.0
  %v1095 = vmax.f32 %v1021, 0.0
  %v1096 = vmax.f32 %v845, 0.0
  %v1097 = vmax.f32 %v1023, 0.0
  %v1098 = vmax.f32 %v848, 0.0
  %v1099 = vmax.f32 %v1026, 0.0
  %v1100 = vmax.f32 %v850, 0.0
  %v1101 = vmax.f32 %v1028, 0.0
  %v1102 = vmax.f32 %v853, 0.0
  %v1103 = vmax.f32 %v1031, 0.0
  %v1104 = vmax.f32 %v855, 0.0
  %v1105 = vmax.f32 %v1033, 0.0
  %v1106 = vmax.f32 %v858, 0.0
  %v1107 = vmax.f32 %v1036, 0.0
  %v1108 = vmax.f32 %v860, 0.0
  %v1109 = vmax.f32 %v1038, 0.0
  %v1110 = vmax.f32 %v863, 0.0
  %v1111 = vmax.f32 %v1041, 0.0
  %v1112 = vmax.f32 %v865, 0.0
  %v1113 = vmax.f32 %v1043, 0.0
  %v1114 = vmax.f32 %v868, 0.0
  %v1115 = vmax.f32 %v1046, 0.0
  %v1116 = vmax.f32 %v870, 0.0
  %v1117 = vmax.f32 %v1048, 0.0
  %v1118 = vmax.f32 %v873, 0.0
  %v1119 = vmax.f32 %v1051, 0.0
  %v1120 = vmax.f32 %v875, 0.0
  %v1121 = vmax.f32 %v1053, 0.0
  %v1122 = vmax.f32 %v878, 0.0
  %v1123 = vmax.f32 %v1056, 0.0
  %v1124 = vmax.f32 %v880, 0.0
  %v1125 = vmax.f32 %v1058, 0.0
  %v1126 = vmax.f32 %v883, 0.0
  %v1127 = vmax.f32 %v1061, 0.0
  %v1128 = vmax.f32 %v885, 0.0
  %v1129 = vmax.f32 %v1063, 0.0
  %v1130 = vmax.f32 %v888, 0.0
  %v1131 = vmax.f32 %v1066, 0.0
  %v1132 = vmax.f32 %v890, 0.0
  %v1133 = vmax.f32 %v1068, 0.0
  %v1134 = vpack.c.bf16 %v1072, %v1070
  %v1135 = vpack.c.bf16 %v1073, %v1071
  %v1136 = vpack.c.bf16 %v1076, %v1074
  %v1137 = vpack.c.bf16 %v1077, %v1075
  %v1138 = vpack.c.bf16 %v1080, %v1078
  %v1139 = vpack.c.bf16 %v1081, %v1079
  %v1140 = vpack.c.bf16 %v1084, %v1082
  %v1141 = vpack.c.bf16 %v1085, %v1083
  %v1142 = vpack.c.bf16 %v1088, %v1086
  %v1143 = vpack.c.bf16 %v1089, %v1087
  %v1144 = vpack.c.bf16 %v1092, %v1090
  %v1145 = vpack.c.bf16 %v1093, %v1091
  %v1146 = vpack.c.bf16 %v1096, %v1094
  %v1147 = vpack.c.bf16 %v1097, %v1095
  %v1148 = vpack.c.bf16 %v1100, %v1098
  %v1149 = vpack.c.bf16 %v1101, %v1099
  %v1150 = vpack.c.bf16 %v1104, %v1102
  %v1151 = vpack.c.bf16 %v1105, %v1103
  %v1152 = vpack.c.bf16 %v1108, %v1106
  %v1153 = vpack.c.bf16 %v1109, %v1107
  %v1154 = vpack.c.bf16 %v1112, %v1110
  %v1155 = vpack.c.bf16 %v1113, %v1111
  %v1156 = vpack.c.bf16 %v1116, %v1114
  %v1157 = vpack.c.bf16 %v1117, %v1115
  %v1158 = vpack.c.bf16 %v1120, %v1118
  %v1159 = vpack.c.bf16 %v1121, %v1119
  %v1160 = vpack.c.bf16 %v1124, %v1122
  %v1161 = vpack.c.bf16 %v1125, %v1123
  %v1162 = vpack.c.bf16 %v1128, %v1126
  %v1163 = vpack.c.bf16 %v1129, %v1127
  %v1164 = vpack.c.bf16 %v1132, %v1130
  %v1165 = vpack.c.bf16 %v1133, %v1131
  %v1166 = vld [vmem:[%s5] sm:$0xf]
  %v1167 = vld [vmem:[%s5 + $0x4] sm:$0xf]
  %v1168 = vld [vmem:[%s5 + $0x8] sm:$0xf]
  %v1169 = vld [vmem:[%s5 + $0xc] sm:$0xf]
  %v1170 = vld [vmem:[%s5 + $0x10] sm:$0xf]
  %v1171 = vld [vmem:[%s5 + $0x14] sm:$0xf]
  %v1172 = vld [vmem:[%s5 + $0x18] sm:$0xf]
  %v1173 = vld [vmem:[%s5 + $0x1c] sm:$0xf]
  %v1174 = vld [vmem:[%s5 + $0x20] sm:$0xf]
  %v1175 = vld [vmem:[%s5 + $0x24] sm:$0xf]
  %v1176 = vld [vmem:[%s5 + $0x28] sm:$0xf]
  %v1177 = vld [vmem:[%s5 + $0x2c] sm:$0xf]
  %v1178 = vld [vmem:[%s5 + $0x30] sm:$0xf]
  %v1179 = vld [vmem:[%s5 + $0x34] sm:$0xf]
  %v1180 = vld [vmem:[%s5 + $0x38] sm:$0xf]
  %v1181 = vld [vmem:[%s5 + $0x3c] sm:$0xf]
  %v1182 = vld [vmem:[%s5 + $0x40] sm:$0xf]
  %v1183 = vld [vmem:[%s5 + $0x44] sm:$0xf]
  %v1184 = vld [vmem:[%s5 + $0x48] sm:$0xf]
  %v1185 = vld [vmem:[%s5 + $0x4c] sm:$0xf]
  %v1186 = vld [vmem:[%s5 + $0x50] sm:$0xf]
  %v1187 = vld [vmem:[%s5 + $0x54] sm:$0xf]
  %v1188 = vld [vmem:[%s5 + $0x58] sm:$0xf]
  %v1189 = vld [vmem:[%s5 + $0x5c] sm:$0xf]
  %v1190 = vld [vmem:[%s5 + $0x60] sm:$0xf]
  %v1191 = vld [vmem:[%s5 + $0x64] sm:$0xf]
  %v1192 = vld [vmem:[%s5 + $0x68] sm:$0xf]
  %v1193 = vld [vmem:[%s5 + $0x6c] sm:$0xf]
  %v1194 = vld [vmem:[%s5 + $0x70] sm:$0xf]
  %v1195 = vld [vmem:[%s5 + $0x74] sm:$0xf]
  %v1196 = vld [vmem:[%s5 + $0x78] sm:$0xf]
  %v1197 = vld [vmem:[%s5 + $0x7c] sm:$0xf]
  %v1198 = vld [vmem:[%s6] sm:$0x1]
  %v1200 = vperm.slane %v1198, 0
  %v1234 = vunpack.c.l.b16 %v1166
  %v1235 = vunpack.c.l.b16 %v1167
  %v1236 = vunpack.c.l.b16 %v1168
  %v1237 = vunpack.c.l.b16 %v1169
  %v1238 = vunpack.c.l.b16 %v1170
  %v1239 = vunpack.c.l.b16 %v1171
  %v1240 = vunpack.c.l.b16 %v1172
  %v1241 = vunpack.c.l.b16 %v1173
  %v1242 = vunpack.c.l.b16 %v1174
  %v1243 = vunpack.c.l.b16 %v1175
  %v1244 = vunpack.c.l.b16 %v1176
  %v1245 = vunpack.c.l.b16 %v1177
  %v1246 = vunpack.c.l.b16 %v1178
  %v1247 = vunpack.c.l.b16 %v1179
  %v1248 = vunpack.c.l.b16 %v1180
  %v1249 = vunpack.c.l.b16 %v1181
  %v1250 = vunpack.c.l.b16 %v1182
  %v1251 = vunpack.c.l.b16 %v1183
  %v1252 = vunpack.c.l.b16 %v1184
  %v1253 = vunpack.c.l.b16 %v1185
  %v1254 = vunpack.c.l.b16 %v1186
  %v1255 = vunpack.c.l.b16 %v1187
  %v1256 = vunpack.c.l.b16 %v1188
  %v1257 = vunpack.c.l.b16 %v1189
  %v1258 = vunpack.c.l.b16 %v1190
  %v1259 = vunpack.c.l.b16 %v1191
  %v1260 = vunpack.c.l.b16 %v1192
  %v1261 = vunpack.c.l.b16 %v1193
  %v1262 = vunpack.c.l.b16 %v1194
  %v1263 = vunpack.c.l.b16 %v1195
  %v1264 = vunpack.c.l.b16 %v1196
  %v1265 = vunpack.c.l.b16 %v1197
  %v1266 = vpack.c.b16 %v1235, %v1234
  %v1267 = vpack.c.b16 %v1237, %v1236
  %v1268 = vpack.c.b16 %v1239, %v1238
  %v1269 = vpack.c.b16 %v1241, %v1240
  %v1270 = vpack.c.b16 %v1243, %v1242
  %v1271 = vpack.c.b16 %v1245, %v1244
  %v1272 = vpack.c.b16 %v1247, %v1246
  %v1273 = vpack.c.b16 %v1249, %v1248
  %v1274 = vpack.c.b16 %v1251, %v1250
  %v1275 = vpack.c.b16 %v1253, %v1252
  %v1276 = vpack.c.b16 %v1255, %v1254
  %v1277 = vpack.c.b16 %v1257, %v1256
  %v1278 = vpack.c.b16 %v1259, %v1258
  %v1279 = vpack.c.b16 %v1261, %v1260
  %v1280 = vpack.c.b16 %v1263, %v1262
  %v1281 = vpack.c.b16 %v1265, %v1264
  %1298 = vmatpush.bf16.msra.mxu0 %v1273
  %1299 = vmatpush.bf16.msra.mxu0 %v1272
  %1300 = vmatpush.bf16.msra.mxu0 %v1271
  %1301 = vmatpush.bf16.msra.mxu0 %v1270
  %1302 = vmatpush.bf16.msra.mxu0 %v1269
  %1303 = vmatpush.bf16.msra.mxu0 %v1268
  %1304 = vmatpush.bf16.msra.mxu0 %v1267
  %1305 = vmatpush.bf16.msra.mxu0 %v1266
  %1306 = vmatmul.bf16.gmra.mxu0 %v1134
  %v1307 = vpop.f32.mrf.mxu0
  %v1308 = vadd.f32 %v1200, %v1307
  %v1309 = vpop.f32.mrf.mxu0
  %v1310 = vadd.f32 %v1200, %v1309
  %1311 = vmatmul.bf16.gmra.mxu0 %v1136
  %v1312 = vpop.f32.mrf.mxu0
  %v1313 = vadd.f32 %v1200, %v1312
  %v1314 = vpop.f32.mrf.mxu0
  %v1315 = vadd.f32 %v1200, %v1314
  %1316 = vmatmul.bf16.gmra.mxu0 %v1138
  %v1317 = vpop.f32.mrf.mxu0
  %v1318 = vadd.f32 %v1200, %v1317
  %v1319 = vpop.f32.mrf.mxu0
  %v1320 = vadd.f32 %v1200, %v1319
  %1321 = vmatmul.bf16.gmra.mxu0 %v1140
  %v1322 = vpop.f32.mrf.mxu0
  %v1323 = vadd.f32 %v1200, %v1322
  %v1324 = vpop.f32.mrf.mxu0
  %v1325 = vadd.f32 %v1200, %v1324
  %1326 = vmatmul.bf16.gmra.mxu0 %v1142
  %v1327 = vpop.f32.mrf.mxu0
  %v1328 = vadd.f32 %v1200, %v1327
  %v1329 = vpop.f32.mrf.mxu0
  %v1330 = vadd.f32 %v1200, %v1329
  %1331 = vmatmul.bf16.gmra.mxu0 %v1144
  %v1332 = vpop.f32.mrf.mxu0
  %v1333 = vadd.f32 %v1200, %v1332
  %v1334 = vpop.f32.mrf.mxu0
  %v1335 = vadd.f32 %v1200, %v1334
  %1336 = vmatmul.bf16.gmra.mxu0 %v1146
  %v1337 = vpop.f32.mrf.mxu0
  %v1338 = vadd.f32 %v1200, %v1337
  %v1339 = vpop.f32.mrf.mxu0
  %v1340 = vadd.f32 %v1200, %v1339
  %1341 = vmatmul.bf16.gmra.mxu0 %v1148
  %v1342 = vpop.f32.mrf.mxu0
  %v1343 = vadd.f32 %v1200, %v1342
  %v1344 = vpop.f32.mrf.mxu0
  %v1345 = vadd.f32 %v1200, %v1344
  %1346 = vmatmul.bf16.gmra.mxu0 %v1150
  %v1347 = vpop.f32.mrf.mxu0
  %v1348 = vadd.f32 %v1200, %v1347
  %v1349 = vpop.f32.mrf.mxu0
  %v1350 = vadd.f32 %v1200, %v1349
  %1351 = vmatmul.bf16.gmra.mxu0 %v1152
  %v1352 = vpop.f32.mrf.mxu0
  %v1353 = vadd.f32 %v1200, %v1352
  %v1354 = vpop.f32.mrf.mxu0
  %v1355 = vadd.f32 %v1200, %v1354
  %1356 = vmatmul.bf16.gmra.mxu0 %v1154
  %v1357 = vpop.f32.mrf.mxu0
  %v1358 = vadd.f32 %v1200, %v1357
  %v1359 = vpop.f32.mrf.mxu0
  %v1360 = vadd.f32 %v1200, %v1359
  %1361 = vmatmul.bf16.gmra.mxu0 %v1156
  %v1362 = vpop.f32.mrf.mxu0
  %v1363 = vadd.f32 %v1200, %v1362
  %v1364 = vpop.f32.mrf.mxu0
  %v1365 = vadd.f32 %v1200, %v1364
  %1366 = vmatmul.bf16.gmra.mxu0 %v1158
  %v1367 = vpop.f32.mrf.mxu0
  %v1368 = vadd.f32 %v1200, %v1367
  %v1369 = vpop.f32.mrf.mxu0
  %v1370 = vadd.f32 %v1200, %v1369
  %1371 = vmatmul.bf16.gmra.mxu0 %v1160
  %v1372 = vpop.f32.mrf.mxu0
  %v1373 = vadd.f32 %v1200, %v1372
  %v1374 = vpop.f32.mrf.mxu0
  %v1375 = vadd.f32 %v1200, %v1374
  %1376 = vmatmul.bf16.gmra.mxu0 %v1162
  %v1377 = vpop.f32.mrf.mxu0
  %v1378 = vadd.f32 %v1200, %v1377
  %v1379 = vpop.f32.mrf.mxu0
  %v1380 = vadd.f32 %v1200, %v1379
  %1381 = vmatmul.bf16.gmra.mxu0 %v1164
  %v1382 = vpop.f32.mrf.mxu0
  %v1383 = vadd.f32 %v1200, %v1382
  %v1384 = vpop.f32.mrf.mxu0
  %v1385 = vadd.f32 %v1200, %v1384
  %1386 = vdwg.mxu0
  %1387 = vmatpush.bf16.msra.mxu0 %v1281
  %1388 = vmatpush.bf16.msra.mxu0 %v1280
  %1389 = vmatpush.bf16.msra.mxu0 %v1279
  %1390 = vmatpush.bf16.msra.mxu0 %v1278
  %1391 = vmatpush.bf16.msra.mxu0 %v1277
  %1392 = vmatpush.bf16.msra.mxu0 %v1276
  %1393 = vmatpush.bf16.msra.mxu0 %v1275
  %1394 = vmatpush.bf16.msra.mxu0 %v1274
  %1395 = vmatmul.bf16.gmra.mxu0 %v1135
  %v1396 = vpop.f32.mrf.mxu0
  %v1397 = vadd.f32 %v1308, %v1396
  %v1398 = vpop.f32.mrf.mxu0
  %v1399 = vadd.f32 %v1310, %v1398
  %1400 = vmatmul.bf16.gmra.mxu0 %v1137
  %v1401 = vpop.f32.mrf.mxu0
  %v1402 = vadd.f32 %v1313, %v1401
  %v1403 = vpop.f32.mrf.mxu0
  %v1404 = vadd.f32 %v1315, %v1403
  %1405 = vmatmul.bf16.gmra.mxu0 %v1139
  %v1406 = vpop.f32.mrf.mxu0
  %v1407 = vadd.f32 %v1318, %v1406
  %v1408 = vpop.f32.mrf.mxu0
  %v1409 = vadd.f32 %v1320, %v1408
  %1410 = vmatmul.bf16.gmra.mxu0 %v1141
  %v1411 = vpop.f32.mrf.mxu0
  %v1412 = vadd.f32 %v1323, %v1411
  %v1413 = vpop.f32.mrf.mxu0
  %v1414 = vadd.f32 %v1325, %v1413
  %1415 = vmatmul.bf16.gmra.mxu0 %v1143
  %v1416 = vpop.f32.mrf.mxu0
  %v1417 = vadd.f32 %v1328, %v1416
  %v1418 = vpop.f32.mrf.mxu0
  %v1419 = vadd.f32 %v1330, %v1418
  %1420 = vmatmul.bf16.gmra.mxu0 %v1145
  %v1421 = vpop.f32.mrf.mxu0
  %v1422 = vadd.f32 %v1333, %v1421
  %v1423 = vpop.f32.mrf.mxu0
  %v1424 = vadd.f32 %v1335, %v1423
  %1425 = vmatmul.bf16.gmra.mxu0 %v1147
  %v1426 = vpop.f32.mrf.mxu0
  %v1427 = vadd.f32 %v1338, %v1426
  %v1428 = vpop.f32.mrf.mxu0
  %v1429 = vadd.f32 %v1340, %v1428
  %1430 = vmatmul.bf16.gmra.mxu0 %v1149
  %v1431 = vpop.f32.mrf.mxu0
  %v1432 = vadd.f32 %v1343, %v1431
  %v1433 = vpop.f32.mrf.mxu0
  %v1434 = vadd.f32 %v1345, %v1433
  %1435 = vmatmul.bf16.gmra.mxu0 %v1151
  %v1436 = vpop.f32.mrf.mxu0
  %v1437 = vadd.f32 %v1348, %v1436
  %v1438 = vpop.f32.mrf.mxu0
  %v1439 = vadd.f32 %v1350, %v1438
  %1440 = vmatmul.bf16.gmra.mxu0 %v1153
  %v1441 = vpop.f32.mrf.mxu0
  %v1442 = vadd.f32 %v1353, %v1441
  %v1443 = vpop.f32.mrf.mxu0
  %v1444 = vadd.f32 %v1355, %v1443
  %1445 = vmatmul.bf16.gmra.mxu0 %v1155
  %v1446 = vpop.f32.mrf.mxu0
  %v1447 = vadd.f32 %v1358, %v1446
  %v1448 = vpop.f32.mrf.mxu0
  %v1449 = vadd.f32 %v1360, %v1448
  %1450 = vmatmul.bf16.gmra.mxu0 %v1157
  %v1451 = vpop.f32.mrf.mxu0
  %v1452 = vadd.f32 %v1363, %v1451
  %v1453 = vpop.f32.mrf.mxu0
  %v1454 = vadd.f32 %v1365, %v1453
  %1455 = vmatmul.bf16.gmra.mxu0 %v1159
  %v1456 = vpop.f32.mrf.mxu0
  %v1457 = vadd.f32 %v1368, %v1456
  %v1458 = vpop.f32.mrf.mxu0
  %v1459 = vadd.f32 %v1370, %v1458
  %1460 = vmatmul.bf16.gmra.mxu0 %v1161
  %v1461 = vpop.f32.mrf.mxu0
  %v1462 = vadd.f32 %v1373, %v1461
  %v1463 = vpop.f32.mrf.mxu0
  %v1464 = vadd.f32 %v1375, %v1463
  %1465 = vmatmul.bf16.gmra.mxu0 %v1163
  %v1466 = vpop.f32.mrf.mxu0
  %v1467 = vadd.f32 %v1378, %v1466
  %v1468 = vpop.f32.mrf.mxu0
  %v1469 = vadd.f32 %v1380, %v1468
  %1470 = vmatmul.bf16.gmra.mxu0 %v1165
  %v1471 = vpop.f32.mrf.mxu0
  %v1472 = vadd.f32 %v1383, %v1471
  %v1473 = vpop.f32.mrf.mxu0
  %v1474 = vadd.f32 %v1385, %v1473
  %1475 = vdwg.mxu0
  %v1476 = vpack.c.bf16 %v1397, %v1397
  %v1477 = vpack.c.bf16 %v1399, %v1399
  %v1478 = vpack.c.bf16 %v1402, %v1402
  %v1479 = vpack.c.bf16 %v1404, %v1404
  %v1480 = vpack.c.bf16 %v1407, %v1407
  %v1481 = vpack.c.bf16 %v1409, %v1409
  %v1482 = vpack.c.bf16 %v1412, %v1412
  %v1483 = vpack.c.bf16 %v1414, %v1414
  %v1484 = vpack.c.bf16 %v1417, %v1417
  %v1485 = vpack.c.bf16 %v1419, %v1419
  %v1486 = vpack.c.bf16 %v1422, %v1422
  %v1487 = vpack.c.bf16 %v1424, %v1424
  %v1488 = vpack.c.bf16 %v1427, %v1427
  %v1489 = vpack.c.bf16 %v1429, %v1429
  %v1490 = vpack.c.bf16 %v1432, %v1432
  %v1491 = vpack.c.bf16 %v1434, %v1434
  %v1492 = vpack.c.bf16 %v1437, %v1437
  %v1493 = vpack.c.bf16 %v1439, %v1439
  %v1494 = vpack.c.bf16 %v1442, %v1442
  %v1495 = vpack.c.bf16 %v1444, %v1444
  %v1496 = vpack.c.bf16 %v1447, %v1447
  %v1497 = vpack.c.bf16 %v1449, %v1449
  %v1498 = vpack.c.bf16 %v1452, %v1452
  %v1499 = vpack.c.bf16 %v1454, %v1454
  %v1500 = vpack.c.bf16 %v1457, %v1457
  %v1501 = vpack.c.bf16 %v1459, %v1459
  %v1502 = vpack.c.bf16 %v1462, %v1462
  %v1503 = vpack.c.bf16 %v1464, %v1464
  %v1504 = vpack.c.bf16 %v1467, %v1467
  %v1505 = vpack.c.bf16 %v1469, %v1469
  %v1506 = vpack.c.bf16 %v1472, %v1472
  %v1507 = vpack.c.bf16 %v1474, %v1474
  %1508 = vst [vmem:[%s7] sm:$0xf] %v1476
  %1509 = vst [vmem:[%s7 + $0x4] sm:$0xf] %v1477
  %1510 = vst [vmem:[%s7 + $0x8] sm:$0xf] %v1478
  %1511 = vst [vmem:[%s7 + $0xc] sm:$0xf] %v1479
  %1512 = vst [vmem:[%s7 + $0x10] sm:$0xf] %v1480
  %1513 = vst [vmem:[%s7 + $0x14] sm:$0xf] %v1481
  %1514 = vst [vmem:[%s7 + $0x18] sm:$0xf] %v1482
  %1515 = vst [vmem:[%s7 + $0x1c] sm:$0xf] %v1483
  %1516 = vst [vmem:[%s7 + $0x20] sm:$0xf] %v1484
  %1517 = vst [vmem:[%s7 + $0x24] sm:$0xf] %v1485
  %1518 = vst [vmem:[%s7 + $0x28] sm:$0xf] %v1486
  %1519 = vst [vmem:[%s7 + $0x2c] sm:$0xf] %v1487
  %1520 = vst [vmem:[%s7 + $0x30] sm:$0xf] %v1488
  %1521 = vst [vmem:[%s7 + $0x34] sm:$0xf] %v1489
  %1522 = vst [vmem:[%s7 + $0x38] sm:$0xf] %v1490
  %1523 = vst [vmem:[%s7 + $0x3c] sm:$0xf] %v1491
  %1524 = vst [vmem:[%s7 + $0x40] sm:$0xf] %v1492
  %1525 = vst [vmem:[%s7 + $0x44] sm:$0xf] %v1493
  %1526 = vst [vmem:[%s7 + $0x48] sm:$0xf] %v1494
  %1527 = vst [vmem:[%s7 + $0x4c] sm:$0xf] %v1495
  %1528 = vst [vmem:[%s7 + $0x50] sm:$0xf] %v1496
  %1529 = vst [vmem:[%s7 + $0x54] sm:$0xf] %v1497
  %1530 = vst [vmem:[%s7 + $0x58] sm:$0xf] %v1498
  %1531 = vst [vmem:[%s7 + $0x5c] sm:$0xf] %v1499
  %1532 = vst [vmem:[%s7 + $0x60] sm:$0xf] %v1500
  %1533 = vst [vmem:[%s7 + $0x64] sm:$0xf] %v1501
  %1534 = vst [vmem:[%s7 + $0x68] sm:$0xf] %v1502
  %1535 = vst [vmem:[%s7 + $0x6c] sm:$0xf] %v1503
  %1536 = vst [vmem:[%s7 + $0x70] sm:$0xf] %v1504
  %1537 = vst [vmem:[%s7 + $0x74] sm:$0xf] %v1505
  %1538 = vst [vmem:[%s7 + $0x78] sm:$0xf] %v1506
  %1539 = vst [vmem:[%s7 + $0x7c] sm:$0xf] %v1507
  // Predicated region
  $region30: #{deep_flow_forward.1} parent=0 // pred_check
    _
  $region31: #{deep_flow_forward.1} parent=0 // pred_check_branch
    %1541 = sbr.rel (0) target = $region33
  $region32: #{deep_flow_forward.1} parent=0 // pred_region
    _
  $region33: #{deep_flow_forward.1} parent=0 // pred_fallthru
    _
  // Predicated region
  $region34: #{deep_flow_forward.1} parent=0 // pred_check
    _
  $region35: #{deep_flow_forward.1} parent=0 // pred_check_branch
    %1543 = sbr.rel (0) target = $region37
  $region36: #{deep_flow_forward.1} parent=0 // pred_region
    _
  $region37: #{deep_flow_forward.1} parent=0 // pred_fallthru
    _

</llo_original>
